<compile_context>
chip_gen: v5e
topology: v5e:2x2
jax: 0.10.0
libtpu: 0.0.40
codegen_flags: <defaults>
</compile_context>

<pallas_src>
import functools

import jax
import jax.numpy as jnp
from jax.experimental import pallas as pl
from jax.experimental.pallas import tpu as pltpu

_LANE = 128      # TPU lane width (last dim)
_SUBLANE = 8     # TPU sublane width (second-to-last dim)
_MAX_BATCH_TILE = 256  # rows per grid step for large batches


def _round_up(n, m):
    return ((n + m - 1) // m) * m


def _apply_activation(y, act):
    if act == "ReLU":
        return jnp.maximum(y, 0.0)
    if act == "Sigmoid":
        return jax.nn.sigmoid(y)   # EUP transcendental, off the VALU path
    if act == "Tanh":
        return jnp.tanh(y)
    return y  # 'None' -> identity


def _fused_mlp_kernel(*refs, activations):
    """One fused kernel for the whole MLP.

    refs = (x_ref, w0_ref, b0_ref, w1_ref, b1_ref, ..., o_ref)
      x_ref : [tm, in_pad]            f32
      w_ref : [in_pad_l, out_pad_l]   bf16  (pre-transposed: y = h @ w)
      b_ref : [1, out_pad_l]          f32
      o_ref : [tm, out_pad_last]      f32
    """
    x_ref = refs[0]
    o_ref = refs[-1]
    param_refs = refs[1:-1]

    n_layers = len(activations)
    h = x_ref[...].astype(jnp.bfloat16)  # bf16 operands, f32 accumulation
    for li in range(n_layers):  # unrolled at trace time; h lives in VMEM/vregs
        w = param_refs[2 * li][...]       # bf16 [in_pad, out_pad]
        b = param_refs[2 * li + 1][...]   # f32  [1, out_pad]
        y = jnp.dot(h, w, preferred_element_type=jnp.float32)
        y = y + b                          # broadcast over batch rows
        y = _apply_activation(y, activations[li])
        if li + 1 < n_layers:
            h = y.astype(jnp.bfloat16)
        else:
            o_ref[...] = y.astype(o_ref.dtype)


def fused_mlp(x_pad, padded_params, activations, *, batch_tile):
    """Run the whole padded MLP in a single pallas_call.

    x_pad: [batch_pad, in_pad] f32 (batch_pad % batch_tile == 0,
                                    in_pad % 128 == 0)
    padded_params: list of (W [in_pad, out_pad] bf16, b [1, out_pad] f32)
    """
    batch_pad, in_pad = x_pad.shape
    out_pad = padded_params[-1][0].shape[1]
    assert batch_pad % batch_tile == 0
    assert in_pad % _LANE == 0 and out_pad % _LANE == 0

    in_specs = [pl.BlockSpec((batch_tile, in_pad), lambda i: (i, 0))]
    flat_params = []
    for (w, b) in padded_params:
        # Constant block index across the grid -> weights/bias stay resident
        # in VMEM, not re-DMA'd for every batch tile.
        in_specs.append(pl.BlockSpec(w.shape, lambda i: (0, 0)))
        in_specs.append(pl.BlockSpec(b.shape, lambda i: (0, 0)))
        flat_params.append(w)
        flat_params.append(b)

    kernel = functools.partial(_fused_mlp_kernel, activations=tuple(activations))
    return pl.pallas_call(
        kernel,
        out_shape=jax.ShapeDtypeStruct((batch_pad, out_pad), jnp.float32),
        grid=(batch_pad // batch_tile,),
        in_specs=in_specs,
        out_specs=pl.BlockSpec((batch_tile, out_pad), lambda i: (i, 0)),
        compiler_params=pltpu.CompilerParams(
            # Batch axis is embarrassingly parallel: split across TCs on v7x.
            dimension_semantics=("parallel",),
        ),
    )(x_pad, *flat_params)


class CustomizableRENNPallas:
    """JAX/Pallas re-implementation of CustomizableRENN's forward pass."""

    def __init__(self, input_size, hidden_layers, output_size, key):
        self.input_size = input_size
        self.output_size = output_size
        self.hidden_layers = hidden_layers
        self.num_layers = len(hidden_layers)
        self.activations = tuple(hl[2] for hl in hidden_layers)

        # Original nn.Linear-layout params (reference / inspection).
        self.params = []          # (W [out, in] f32, b [out] f32)
        # Kernel-layout params: pre-transposed, lane-padded, bf16 weights.
        self.padded_params = []   # (Wt [in_pad, out_pad] bf16, b [1, out_pad] f32)

        for layer in range(self.num_layers):
            if layer == 0:
                fan_in, fan_out = input_size, hidden_layers[layer][1]
            elif layer == self.num_layers - 1:
                fan_in, fan_out = hidden_layers[layer - 1][1], output_size
            else:
                fan_in, fan_out = hidden_layers[layer - 1][1], hidden_layers[layer][1]

            key, wkey, bkey = jax.random.split(key, 3)
            # Deterministic init matching nn.Linear default U(-1/sqrt(in), 1/sqrt(in)).
            bound = 1.0 / float(fan_in) ** 0.5
            w = jax.random.uniform(wkey, (fan_out, fan_in), jnp.float32, -bound, bound)
            b = jax.random.uniform(bkey, (fan_out,), jnp.float32, -bound, bound)
            self.params.append((w, b))

            in_pad = _round_up(fan_in, _LANE)
            out_pad = _round_up(fan_out, _LANE)
            # Zero-padded rows/cols contribute nothing: padded input columns
            # always meet zero weight rows, padded outputs are sliced away.
            wt = jnp.zeros((in_pad, out_pad), jnp.float32)
            wt = wt.at[:fan_in, :fan_out].set(w.T)
            b_pad = jnp.zeros((1, out_pad), jnp.float32)
            b_pad = b_pad.at[0, :fan_out].set(b)
            self.padded_params.append((wt.astype(jnp.bfloat16), b_pad))

    def forward(self, x):
        batch, in_features = x.shape
        assert in_features == self.input_size

        # Tile selection: whole batch in one tile when small; otherwise
        # 256-row tiles (parallel grid axis) with the batch padded to a
        # multiple of the tile so the grid divides evenly.
        if batch <= _MAX_BATCH_TILE:
            batch_tile = _round_up(batch, _SUBLANE)
        else:
            batch_tile = _MAX_BATCH_TILE
        batch_pad = _round_up(batch, batch_tile)

        in_pad = self.padded_params[0][0].shape[0]
        x_pad = jnp.zeros((batch_pad, in_pad), jnp.float32)
        x_pad = x_pad.at[:batch, :in_features].set(x)
        out_pad = fused_mlp(
            x_pad, self.padded_params, self.activations, batch_tile=batch_tile
        )
        return out_pad[:batch, : self.output_size]


if __name__ == "__main__":
    # Small, deterministic configuration consistent with the module's spec format.
    input_size = 16
    output_size = 10
    hidden_layers = [
        ("Linear", 32, "ReLU"),
        ("Linear", 32, "Sigmoid"),
        ("Linear", 32, "Tanh"),
        ("Linear", 32, "None"),
    ]
    batch = 8

    key = jax.random.PRNGKey(0)
    key, xkey = jax.random.split(key)
    x = jax.random.normal(xkey, (batch, input_size), jnp.float32)

    model = CustomizableRENNPallas(input_size, hidden_layers, output_size, key)
    out = model.forward(x)
    out = jax.block_until_ready(out)

    assert out.shape == (batch, output_size), out.shape
    assert out.dtype == jnp.float32, out.dtype

    # Reference 1: pure-JAX replay of the exact kernel arithmetic
    # (bf16 operands, f32 accumulation, padded params) -> tight tolerance.
    batch_pad = _round_up(batch, _SUBLANE)
    in_pad = model.padded_params[0][0].shape[0]
    x_pad = jnp.zeros((batch_pad, in_pad), jnp.float32).at[:batch, :input_size].set(x)
    h = x_pad.astype(jnp.bfloat16)
    ref_bf16 = None
    for li, ((wt, b_pad), act) in enumerate(zip(model.padded_params, model.activations)):
        y = jnp.dot(h, wt, preferred_element_type=jnp.float32) + b_pad
        y = _apply_activation(y, act)
        if li + 1 < model.num_layers:
            h = y.astype(jnp.bfloat16)
        else:
            ref_bf16 = y[:batch, :output_size]
    assert jnp.allclose(out, ref_bf16, atol=1e-4, rtol=1e-4), (
        float(jnp.max(jnp.abs(out - ref_bf16)))
    )

    # Reference 2: full-f32 nn.Linear semantics (loose tolerance: bf16 matmul
    # operands introduce ~0.4% relative rounding per layer).
    ref = x
    for (w, b), (_, _, act) in zip(model.params, hidden_layers):
        ref = ref @ w.T + b[None, :]
        ref = _apply_activation(ref, act)
    assert jnp.allclose(out, ref, atol=1e-1, rtol=1e-1), (
        float(jnp.max(jnp.abs(out - ref)))
    )

    print("KERNEL_OK")
</pallas_src>

<mosaic_0001>
module attributes {stable_mosaic.version = 11 : i64} {
  func.func @_fused_mlp_kernel(%arg0: i32, %arg1: memref<8x128xf32, #tpu.memory_space<vmem>>, %arg2: memref<128x128xbf16, #tpu.memory_space<vmem>>, %arg3: memref<1x128xf32, #tpu.memory_space<vmem>>, %arg4: memref<128x128xbf16, #tpu.memory_space<vmem>>, %arg5: memref<1x128xf32, #tpu.memory_space<vmem>>, %arg6: memref<128x128xbf16, #tpu.memory_space<vmem>>, %arg7: memref<1x128xf32, #tpu.memory_space<vmem>>, %arg8: memref<128x128xbf16, #tpu.memory_space<vmem>>, %arg9: memref<1x128xf32, #tpu.memory_space<vmem>>, %arg10: memref<8x128xf32, #tpu.memory_space<vmem>>) attributes {dimension_semantics = [#tpu.dimension_semantics<parallel>], iteration_bounds = array<i64: 1>, scalar_prefetch = 0 : i64, scratch_operands = 0 : i64, tpu.core_type = #tpu.core_type<tc>, window_params = [{transform_indices = @transform_0, window_bounds = array<i64: 8, 128>}, {pipeline_mode = #tpu.pipeline_mode<synchronous>, transform_indices = @transform_1, window_bounds = array<i64: 128, 128>}, {pipeline_mode = #tpu.pipeline_mode<synchronous>, transform_indices = @transform_2, window_bounds = array<i64: 1, 128>}, {pipeline_mode = #tpu.pipeline_mode<synchronous>, transform_indices = @transform_3, window_bounds = array<i64: 128, 128>}, {pipeline_mode = #tpu.pipeline_mode<synchronous>, transform_indices = @transform_4, window_bounds = array<i64: 1, 128>}, {pipeline_mode = #tpu.pipeline_mode<synchronous>, transform_indices = @transform_5, window_bounds = array<i64: 128, 128>}, {pipeline_mode = #tpu.pipeline_mode<synchronous>, transform_indices = @transform_6, window_bounds = array<i64: 1, 128>}, {pipeline_mode = #tpu.pipeline_mode<synchronous>, transform_indices = @transform_7, window_bounds = array<i64: 128, 128>}, {pipeline_mode = #tpu.pipeline_mode<synchronous>, transform_indices = @transform_8, window_bounds = array<i64: 1, 128>}, {transform_indices = @transform_9, window_bounds = array<i64: 8, 128>}]} {
    %c0 = arith.constant 0 : index
    %c0_0 = arith.constant 0 : index
    %0 = vector.load %arg1[%c0, %c0_0] : memref<8x128xf32, #tpu.memory_space<vmem>>, vector<8x128xf32>
    %1 = arith.truncf %0 : vector<8x128xf32> to vector<8x128xbf16>
    %c0_1 = arith.constant 0 : index
    %c0_2 = arith.constant 0 : index
    %2 = vector.load %arg2[%c0_1, %c0_2] : memref<128x128xbf16, #tpu.memory_space<vmem>>, vector<128x128xbf16>
    %c0_3 = arith.constant 0 : index
    %c0_4 = arith.constant 0 : index
    %3 = vector.load %arg3[%c0_3, %c0_4] : memref<1x128xf32, #tpu.memory_space<vmem>>, vector<1x128xf32>
    %cst = arith.constant dense<0.000000e+00> : vector<8x128xf32>
    %4 = tpu.matmul %1, %2, %cst {dimension_numbers = #tpu.dot_dimension_numbers<[1], [0], [0], [1], [0, 0, 1, 1], [], []>} : vector<8x128xbf16>, vector<128x128xbf16>, vector<8x128xf32> -> vector<8x128xf32>
    %5 = vector.broadcast %3 : vector<1x128xf32> to vector<8x128xf32>
    %6 = arith.addf %4, %5 : vector<8x128xf32>
    %cst_5 = arith.constant 0.000000e+00 : f32
    %7 = vector.broadcast %cst_5 : f32 to vector<8x128xf32>
    %8 = arith.maximumf %6, %7 : vector<8x128xf32>
    %9 = arith.truncf %8 : vector<8x128xf32> to vector<8x128xbf16>
    %c0_6 = arith.constant 0 : index
    %c0_7 = arith.constant 0 : index
    %10 = vector.load %arg4[%c0_6, %c0_7] : memref<128x128xbf16, #tpu.memory_space<vmem>>, vector<128x128xbf16>
    %c0_8 = arith.constant 0 : index
    %c0_9 = arith.constant 0 : index
    %11 = vector.load %arg5[%c0_8, %c0_9] : memref<1x128xf32, #tpu.memory_space<vmem>>, vector<1x128xf32>
    %cst_10 = arith.constant dense<0.000000e+00> : vector<8x128xf32>
    %12 = tpu.matmul %9, %10, %cst_10 {dimension_numbers = #tpu.dot_dimension_numbers<[1], [0], [0], [1], [0, 0, 1, 1], [], []>} : vector<8x128xbf16>, vector<128x128xbf16>, vector<8x128xf32> -> vector<8x128xf32>
    %13 = vector.broadcast %11 : vector<1x128xf32> to vector<8x128xf32>
    %14 = arith.addf %12, %13 : vector<8x128xf32>
    %15 = arith.negf %14 : vector<8x128xf32>
    %16 = math.exp %15 : vector<8x128xf32>
    %cst_11 = arith.constant 1.000000e+00 : f32
    %17 = vector.broadcast %cst_11 : f32 to vector<8x128xf32>
    %18 = arith.addf %17, %16 : vector<8x128xf32>
    %19 = arith.divf %17, %18 : vector<8x128xf32>
    %20 = arith.truncf %19 : vector<8x128xf32> to vector<8x128xbf16>
    %c0_12 = arith.constant 0 : index
    %c0_13 = arith.constant 0 : index
    %21 = vector.load %arg6[%c0_12, %c0_13] : memref<128x128xbf16, #tpu.memory_space<vmem>>, vector<128x128xbf16>
    %c0_14 = arith.constant 0 : index
    %c0_15 = arith.constant 0 : index
    %22 = vector.load %arg7[%c0_14, %c0_15] : memref<1x128xf32, #tpu.memory_space<vmem>>, vector<1x128xf32>
    %cst_16 = arith.constant dense<0.000000e+00> : vector<8x128xf32>
    %23 = tpu.matmul %20, %21, %cst_16 {dimension_numbers = #tpu.dot_dimension_numbers<[1], [0], [0], [1], [0, 0, 1, 1], [], []>} : vector<8x128xbf16>, vector<128x128xbf16>, vector<8x128xf32> -> vector<8x128xf32>
    %24 = vector.broadcast %22 : vector<1x128xf32> to vector<8x128xf32>
    %25 = arith.addf %23, %24 : vector<8x128xf32>
    %26 = math.tanh %25 : vector<8x128xf32>
    %27 = arith.truncf %26 : vector<8x128xf32> to vector<8x128xbf16>
    %c0_17 = arith.constant 0 : index
    %c0_18 = arith.constant 0 : index
    %28 = vector.load %arg8[%c0_17, %c0_18] : memref<128x128xbf16, #tpu.memory_space<vmem>>, vector<128x128xbf16>
    %c0_19 = arith.constant 0 : index
    %c0_20 = arith.constant 0 : index
    %29 = vector.load %arg9[%c0_19, %c0_20] : memref<1x128xf32, #tpu.memory_space<vmem>>, vector<1x128xf32>
    %cst_21 = arith.constant dense<0.000000e+00> : vector<8x128xf32>
    %30 = tpu.matmul %27, %28, %cst_21 {dimension_numbers = #tpu.dot_dimension_numbers<[1], [0], [0], [1], [0, 0, 1, 1], [], []>} : vector<8x128xbf16>, vector<128x128xbf16>, vector<8x128xf32> -> vector<8x128xf32>
    %31 = vector.broadcast %29 : vector<1x128xf32> to vector<8x128xf32>
    %32 = arith.addf %30, %31 : vector<8x128xf32>
    %c0_22 = arith.constant 0 : index
    %c0_23 = arith.constant 0 : index
    %33 = vector.load %arg10[%c0_22, %c0_23] : memref<8x128xf32, #tpu.memory_space<vmem>>, vector<8x128xf32>
    tpu.vector_store %arg10[%c0_22, %c0_23], %32 {strides = array<i32>} : memref<8x128xf32, #tpu.memory_space<vmem>>, vector<8x128xf32>,
    return
  }
  func.func @transform_0(%arg0: i32) -> (i32, i32) {
    %c0_i32 = arith.constant 0 : i32
    %c0_i32_0 = arith.constant 0 : i32
    return %arg0, %c0_i32 : i32, i32
  }
  func.func @transform_1(%arg0: i32) -> (i32, i32) {
    %c0_i32 = arith.constant 0 : i32
    %c0_i32_0 = arith.constant 0 : i32
    %c0_i32_1 = arith.constant 0 : i32
    return %c0_i32, %c0_i32_0 : i32, i32
  }
  func.func @transform_2(%arg0: i32) -> (i32, i32) {
    %c0_i32 = arith.constant 0 : i32
    %c0_i32_0 = arith.constant 0 : i32
    %c0_i32_1 = arith.constant 0 : i32
    return %c0_i32, %c0_i32_0 : i32, i32
  }
  func.func @transform_3(%arg0: i32) -> (i32, i32) {
    %c0_i32 = arith.constant 0 : i32
    %c0_i32_0 = arith.constant 0 : i32
    %c0_i32_1 = arith.constant 0 : i32
    return %c0_i32, %c0_i32_0 : i32, i32
  }
  func.func @transform_4(%arg0: i32) -> (i32, i32) {
    %c0_i32 = arith.constant 0 : i32
    %c0_i32_0 = arith.constant 0 : i32
    %c0_i32_1 = arith.constant 0 : i32
    return %c0_i32, %c0_i32_0 : i32, i32
  }
  func.func @transform_5(%arg0: i32) -> (i32, i32) {
    %c0_i32 = arith.constant 0 : i32
    %c0_i32_0 = arith.constant 0 : i32
    %c0_i32_1 = arith.constant 0 : i32
    return %c0_i32, %c0_i32_0 : i32, i32
  }
  func.func @transform_6(%arg0: i32) -> (i32, i32) {
    %c0_i32 = arith.constant 0 : i32
    %c0_i32_0 = arith.constant 0 : i32
    %c0_i32_1 = arith.constant 0 : i32
    return %c0_i32, %c0_i32_0 : i32, i32
  }
  func.func @transform_7(%arg0: i32) -> (i32, i32) {
    %c0_i32 = arith.constant 0 : i32
    %c0_i32_0 = arith.constant 0 : i32
    %c0_i32_1 = arith.constant 0 : i32
    return %c0_i32, %c0_i32_0 : i32, i32
  }
  func.func @transform_8(%arg0: i32) -> (i32, i32) {
    %c0_i32 = arith.constant 0 : i32
    %c0_i32_0 = arith.constant 0 : i32
    %c0_i32_1 = arith.constant 0 : i32
    return %c0_i32, %c0_i32_0 : i32, i32
  }
  func.func @transform_9(%arg0: i32) -> (i32, i32) {
    %c0_i32 = arith.constant 0 : i32
    %c0_i32_0 = arith.constant 0 : i32
    return %arg0, %c0_i32 : i32, i32
  }
}

</mosaic_0001>

<llo_original>
// kernel: tpu_custom_call.1
$region0: #{tpu_custom_call.1}
  #allocation0 [shape = 'u32[]', space=smem, size = 0x4, offset = 0x4, fixed_abs, tag = 'smem constant byte address 0x4 - core index']
  #allocation1 [shape = 'u32[72,128]{1,0:T(1,128)}', space=vmem, size = 0x9000, scoped, tag = 'internal scratch']
  %s0 = inlined_call_operand.hbm [shape: f32[8,128], index: 0, kind: input, shape index: {}]
  %s1 = inlined_call_operand.hbm [shape: bf16[128,128], index: 1, kind: input, shape index: {}]
  %s2 = inlined_call_operand.vmem [shape: f32[1,128], index: 2, kind: input, shape index: {}]
  %s3 = inlined_call_operand.hbm [shape: bf16[128,128], index: 3, kind: input, shape index: {}]
  %s4 = inlined_call_operand.vmem [shape: f32[1,128], index: 4, kind: input, shape index: {}]
  %s5 = inlined_call_operand.hbm [shape: bf16[128,128], index: 5, kind: input, shape index: {}]
  %s6 = inlined_call_operand.vmem [shape: f32[1,128], index: 6, kind: input, shape index: {}]
  %s7 = inlined_call_operand.hbm [shape: bf16[128,128], index: 7, kind: input, shape index: {}]
  %s8 = inlined_call_operand.vmem [shape: f32[1,128], index: 8, kind: input, shape index: {}]
  %s9 = inlined_call_operand.hbm [shape: f32[8,128], index: 9, kind: output, shape index: {}]
  %s10 = sld [smem:[#allocation0]]
  $region66: #{tpu_custom_call.1} parent=0
    _
  %s12 = ssub.s32 1, %s10
  %s13 = scalar_select 0, %s12, %s10
  $region1: #{tpu_custom_call.1} parent=0
    #allocation2 [shape = 'u8[4096]{0}', space=vmem, size = 0x1000, scoped, tag = 'input window, operand 0, single buffered']
    #allocation3 [shape = 's32[1]{0}', space=sflag, size = 0x4, scoped, tag = 'scoped memory for tpu_custom_call.1']
    #allocation4 [shape = 's32[1]{0}', space=sflag, size = 0x4, scoped, tag = 'scoped memory for tpu_custom_call.1']
    #allocation5 [shape = 'u8[32768]{0}', space=vmem, size = 0x8000, scoped, tag = 'input window, operand 1, single buffered']
    #allocation6 [shape = 's32[1]{0}', space=sflag, size = 0x4, scoped, tag = 'scoped memory for tpu_custom_call.1']
    #allocation7 [shape = 'u8[32768]{0}', space=vmem, size = 0x8000, scoped, tag = 'input window, operand 3, single buffered']
    #allocation8 [shape = 'u8[32768]{0}', space=vmem, size = 0x8000, scoped, tag = 'input window, operand 5, single buffered']
    #allocation9 [shape = 's32[1]{0}', space=sflag, size = 0x4, scoped, tag = 'scoped memory for tpu_custom_call.1']
    #allocation10 [shape = 'u8[32768]{0}', space=vmem, size = 0x8000, scoped, tag = 'input window, operand 7, single buffered']
    #allocation11 [shape = 'u8[4096]{0}', space=vmem, size = 0x1000, scoped, tag = 'output window, operand 0, single buffered']
    %14 = vsyncpa [#allocation3], 0
    %15 = vsyncpa [#allocation6], 0
    %16 = vsyncpa [#allocation9], 0
    %17 = vsyncpa [#allocation4], 0
    // Predicated region
    $region2: #{tpu_custom_call.1} parent=1 // pred_check
      _
    $region3: #{tpu_custom_call.1} parent=1 // pred_check_branch
      %19 = sbr.rel (0) target = $region5
    $region4: #{tpu_custom_call.1} parent=1 // pred_region
      %21 = vsyncadd [#allocation3], 0
      %s23 = sshll.u32 %s0, 4
      %s24 = int_to_ptr.hbm [resolvable:$true] %s23
      %s25 = sshll.u32 [#allocation2], 4
      %s26 = int_to_ptr.vmem [resolvable:$true] %s25
      %28 = dma.hbm_to_vmem [thread:$0]  %s24, 128, %s26, [#allocation3]
    $region5: #{tpu_custom_call.1} parent=1 // pred_fallthru
      _
    // Predicated region
    $region6: #{tpu_custom_call.1} parent=1 // pred_check
      _
    $region7: #{tpu_custom_call.1} parent=1 // pred_check_branch
      %30 = sbr.rel (0) target = $region9
    $region8: #{tpu_custom_call.1} parent=1 // pred_region
      %32 = vsyncadd [#allocation6], 0
      %s33 = sshll.u32 %s1, 4
      %s34 = int_to_ptr.hbm [resolvable:$true] %s33
      %s35 = sshll.u32 [#allocation5], 4
      %s36 = int_to_ptr.vmem [resolvable:$true] %s35
      %41 = dma.hbm_to_vmem [thread:$0]  %s34, 1024, %s36, [#allocation6], 64, 64, 4
    $region9: #{tpu_custom_call.1} parent=1 // pred_fallthru
      _
    // Predicated region
    $region10: #{tpu_custom_call.1} parent=1 // pred_check
      _
    $region11: #{tpu_custom_call.1} parent=1 // pred_check_branch
      %43 = sbr.rel (0) target = $region13
    $region12: #{tpu_custom_call.1} parent=1 // pred_region
      _
    $region13: #{tpu_custom_call.1} parent=1 // pred_fallthru
      _
    // Predicated region
    $region14: #{tpu_custom_call.1} parent=1 // pred_check
      _
    $region15: #{tpu_custom_call.1} parent=1 // pred_check_branch
      %45 = sbr.rel (0) target = $region17
    $region16: #{tpu_custom_call.1} parent=1 // pred_region
      %47 = vsyncadd [#allocation6], 0
      %s48 = sshll.u32 %s3, 4
      %s49 = int_to_ptr.hbm [resolvable:$true] %s48
      %s50 = sshll.u32 [#allocation7], 4
      %s51 = int_to_ptr.vmem [resolvable:$true] %s50
      %56 = dma.hbm_to_vmem [thread:$0]  %s49, 1024, %s51, [#allocation6], 64, 64, 4
    $region17: #{tpu_custom_call.1} parent=1 // pred_fallthru
      _
    // Predicated region
    $region18: #{tpu_custom_call.1} parent=1 // pred_check
      _
    $region19: #{tpu_custom_call.1} parent=1 // pred_check_branch
      %58 = sbr.rel (0) target = $region21
    $region20: #{tpu_custom_call.1} parent=1 // pred_region
      _
    $region21: #{tpu_custom_call.1} parent=1 // pred_fallthru
      _
    // Predicated region
    $region22: #{tpu_custom_call.1} parent=1 // pred_check
      _
    $region23: #{tpu_custom_call.1} parent=1 // pred_check_branch
      %60 = sbr.rel (0) target = $region25
    $region24: #{tpu_custom_call.1} parent=1 // pred_region
      %62 = vsyncadd [#allocation9], 0
      %s63 = sshll.u32 %s5, 4
      %s64 = int_to_ptr.hbm [resolvable:$true] %s63
      %s65 = sshll.u32 [#allocation8], 4
      %s66 = int_to_ptr.vmem [resolvable:$true] %s65
      %71 = dma.hbm_to_vmem [thread:$0]  %s64, 1024, %s66, [#allocation9], 64, 64, 4
    $region25: #{tpu_custom_call.1} parent=1 // pred_fallthru
      _
    // Predicated region
    $region26: #{tpu_custom_call.1} parent=1 // pred_check
      _
    $region27: #{tpu_custom_call.1} parent=1 // pred_check_branch
      %73 = sbr.rel (0) target = $region29
    $region28: #{tpu_custom_call.1} parent=1 // pred_region
      _
    $region29: #{tpu_custom_call.1} parent=1 // pred_fallthru
      _
    // Predicated region
    $region30: #{tpu_custom_call.1} parent=1 // pred_check
      _
    $region31: #{tpu_custom_call.1} parent=1 // pred_check_branch
      %75 = sbr.rel (0) target = $region33
    $region32: #{tpu_custom_call.1} parent=1 // pred_region
      %77 = vsyncadd [#allocation9], 0
      %s78 = sshll.u32 %s7, 4
      %s79 = int_to_ptr.hbm [resolvable:$true] %s78
      %s80 = sshll.u32 [#allocation10], 4
      %s81 = int_to_ptr.vmem [resolvable:$true] %s80
      %86 = dma.hbm_to_vmem [thread:$0]  %s79, 1024, %s81, [#allocation9], 64, 64, 4
    $region33: #{tpu_custom_call.1} parent=1 // pred_fallthru
      _
    // Predicated region
    $region34: #{tpu_custom_call.1} parent=1 // pred_check
      _
    $region35: #{tpu_custom_call.1} parent=1 // pred_check_branch
      %88 = sbr.rel (0) target = $region37
    $region36: #{tpu_custom_call.1} parent=1 // pred_region
      _
    $region37: #{tpu_custom_call.1} parent=1 // pred_fallthru
      _
    // Predicated region
    $region38: #{tpu_custom_call.1} parent=1 // pred_check
      _
    $region39: #{tpu_custom_call.1} parent=1 // pred_check_branch
      %90 = sbr.rel (0) target = $region41
    $region40: #{tpu_custom_call.1} parent=1 // pred_region
      %92 = dma.done [#allocation3], 128
    $region41: #{tpu_custom_call.1} parent=1 // pred_fallthru
      _
    // Predicated region
    $region42: #{tpu_custom_call.1} parent=1 // pred_check
      _
    $region43: #{tpu_custom_call.1} parent=1 // pred_check_branch
      %94 = sbr.rel (0) target = $region45
    $region44: #{tpu_custom_call.1} parent=1 // pred_region
      %96 = dma.done [#allocation6], 1024
    $region45: #{tpu_custom_call.1} parent=1 // pred_fallthru
      _
    // Predicated region
    $region46: #{tpu_custom_call.1} parent=1 // pred_check
      _
    $region47: #{tpu_custom_call.1} parent=1 // pred_check_branch
      %98 = sbr.rel (0) target = $region49
    $region48: #{tpu_custom_call.1} parent=1 // pred_region
      %100 = dma.done [#allocation6], 1024
    $region49: #{tpu_custom_call.1} parent=1 // pred_fallthru
      _
    // Predicated region
    $region50: #{tpu_custom_call.1} parent=1 // pred_check
      _
    $region51: #{tpu_custom_call.1} parent=1 // pred_check_branch
      %102 = sbr.rel (0) target = $region53
    $region52: #{tpu_custom_call.1} parent=1 // pred_region
      %104 = dma.done [#allocation9], 1024
    $region53: #{tpu_custom_call.1} parent=1 // pred_fallthru
      _
    // Predicated region
    $region54: #{tpu_custom_call.1} parent=1 // pred_check
      _
    $region55: #{tpu_custom_call.1} parent=1 // pred_check_branch
      %106 = sbr.rel (0) target = $region57
    $region56: #{tpu_custom_call.1} parent=1 // pred_region
      %108 = dma.done [#allocation9], 1024
    $region57: #{tpu_custom_call.1} parent=1 // pred_fallthru
      _
    %v109 = vld [vmem:[#allocation2] sm:$0xff]
    %v110 = vpack.c.bf16 %v109, %v109
    %v111 = vld [vmem:[#allocation5] sm:$0xf]
    %v112 = vld [vmem:[#allocation5 + $0x4] sm:$0xf]
    %v113 = vld [vmem:[#allocation5 + $0x8] sm:$0xf]
    %v114 = vld [vmem:[#allocation5 + $0xc] sm:$0xf]
    %v115 = vld [vmem:[#allocation5 + $0x10] sm:$0xf]
    %v116 = vld [vmem:[#allocation5 + $0x14] sm:$0xf]
    %v117 = vld [vmem:[#allocation5 + $0x18] sm:$0xf]
    %v118 = vld [vmem:[#allocation5 + $0x1c] sm:$0xf]
    %v119 = vld [vmem:[#allocation5 + $0x20] sm:$0xf]
    %v120 = vld [vmem:[#allocation5 + $0x24] sm:$0xf]
    %v121 = vld [vmem:[#allocation5 + $0x28] sm:$0xf]
    %v122 = vld [vmem:[#allocation5 + $0x2c] sm:$0xf]
    %v123 = vld [vmem:[#allocation5 + $0x30] sm:$0xf]
    %v124 = vld [vmem:[#allocation5 + $0x34] sm:$0xf]
    %v125 = vld [vmem:[#allocation5 + $0x38] sm:$0xf]
    %v126 = vld [vmem:[#allocation5 + $0x3c] sm:$0xf]
    %v127 = vld [vmem:[%s2] sm:$0x1]
    %v129 = vperm.slane %v127, 0
    %v147 = vunpack.c.l.b16 %v111
    %v148 = vunpack.c.l.b16 %v112
    %v149 = vunpack.c.l.b16 %v113
    %v150 = vunpack.c.l.b16 %v114
    %v151 = vunpack.c.l.b16 %v115
    %v152 = vunpack.c.l.b16 %v116
    %v153 = vunpack.c.l.b16 %v117
    %v154 = vunpack.c.l.b16 %v118
    %v155 = vunpack.c.l.b16 %v119
    %v156 = vunpack.c.l.b16 %v120
    %v157 = vunpack.c.l.b16 %v121
    %v158 = vunpack.c.l.b16 %v122
    %v159 = vunpack.c.l.b16 %v123
    %v160 = vunpack.c.l.b16 %v124
    %v161 = vunpack.c.l.b16 %v125
    %v162 = vunpack.c.l.b16 %v126
    %v163 = vpack.c.b16 %v148, %v147
    %v164 = vpack.c.b16 %v150, %v149
    %v165 = vpack.c.b16 %v152, %v151
    %v166 = vpack.c.b16 %v154, %v153
    %v167 = vpack.c.b16 %v156, %v155
    %v168 = vpack.c.b16 %v158, %v157
    %v169 = vpack.c.b16 %v160, %v159
    %v170 = vpack.c.b16 %v162, %v161
    %179 = vmatpush.bf16.msra.mxu0 %v170
    %180 = vmatpush.bf16.msra.mxu0 %v169
    %181 = vmatpush.bf16.msra.mxu0 %v168
    %182 = vmatpush.bf16.msra.mxu0 %v167
    %183 = vmatpush.bf16.msra.mxu0 %v166
    %184 = vmatpush.bf16.msra.mxu0 %v165
    %185 = vmatpush.bf16.msra.mxu0 %v164
    %186 = vmatpush.bf16.msra.mxu0 %v163
    %187 = vmatmul.bf16.gmra.mxu0 %v110
    %v188 = vpop.f32.mrf.mxu0
    %v189 = vadd.f32 %v129, %v188
    %v190 = vpop.f32.mrf.mxu0
    %191 = vdwg.mxu0
    %v192 = vmax.f32 %v189, 0.0
    %v193 = vpack.c.bf16 %v192, %v192
    %v194 = vld [vmem:[#allocation7] sm:$0xf]
    %v195 = vld [vmem:[#allocation7 + $0x4] sm:$0xf]
    %v196 = vld [vmem:[#allocation7 + $0x8] sm:$0xf]
    %v197 = vld [vmem:[#allocation7 + $0xc] sm:$0xf]
    %v198 = vld [vmem:[#allocation7 + $0x10] sm:$0xf]
    %v199 = vld [vmem:[#allocation7 + $0x14] sm:$0xf]
    %v200 = vld [vmem:[#allocation7 + $0x18] sm:$0xf]
    %v201 = vld [vmem:[#allocation7 + $0x1c] sm:$0xf]
    %v202 = vld [vmem:[#allocation7 + $0x20] sm:$0xf]
    %v203 = vld [vmem:[#allocation7 + $0x24] sm:$0xf]
    %v204 = vld [vmem:[#allocation7 + $0x28] sm:$0xf]
    %v205 = vld [vmem:[#allocation7 + $0x2c] sm:$0xf]
    %v206 = vld [vmem:[#allocation7 + $0x30] sm:$0xf]
    %v207 = vld [vmem:[#allocation7 + $0x34] sm:$0xf]
    %v208 = vld [vmem:[#allocation7 + $0x38] sm:$0xf]
    %v209 = vld [vmem:[#allocation7 + $0x3c] sm:$0xf]
    %v210 = vld [vmem:[%s4] sm:$0x1]
    %v212 = vperm.slane %v210, 0
    %v230 = vunpack.c.l.b16 %v194
    %v231 = vunpack.c.l.b16 %v195
    %v232 = vunpack.c.l.b16 %v196
    %v233 = vunpack.c.l.b16 %v197
    %v234 = vunpack.c.l.b16 %v198
    %v235 = vunpack.c.l.b16 %v199
    %v236 = vunpack.c.l.b16 %v200
    %v237 = vunpack.c.l.b16 %v201
    %v238 = vunpack.c.l.b16 %v202
    %v239 = vunpack.c.l.b16 %v203
    %v240 = vunpack.c.l.b16 %v204
    %v241 = vunpack.c.l.b16 %v205
    %v242 = vunpack.c.l.b16 %v206
    %v243 = vunpack.c.l.b16 %v207
    %v244 = vunpack.c.l.b16 %v208
    %v245 = vunpack.c.l.b16 %v209
    %v246 = vpack.c.b16 %v231, %v230
    %v247 = vpack.c.b16 %v233, %v232
    %v248 = vpack.c.b16 %v235, %v234
    %v249 = vpack.c.b16 %v237, %v236
    %v250 = vpack.c.b16 %v239, %v238
    %v251 = vpack.c.b16 %v241, %v240
    %v252 = vpack.c.b16 %v243, %v242
    %v253 = vpack.c.b16 %v245, %v244
    %262 = vmatpush.bf16.msra.mxu0 %v253
    %263 = vmatpush.bf16.msra.mxu0 %v252
    %264 = vmatpush.bf16.msra.mxu0 %v251
    %265 = vmatpush.bf16.msra.mxu0 %v250
    %266 = vmatpush.bf16.msra.mxu0 %v249
    %267 = vmatpush.bf16.msra.mxu0 %v248
    %268 = vmatpush.bf16.msra.mxu0 %v247
    %269 = vmatpush.bf16.msra.mxu0 %v246
    %270 = vmatmul.bf16.gmra.mxu0 %v193
    %v271 = vpop.f32.mrf.mxu0
    %v272 = vadd.f32 %v212, %v271
    %v273 = vpop.f32.mrf.mxu0
    %274 = vdwg.mxu0
    %v275 = vxor.u32 %v272, 2147483648
    %v276 = vmul.f32 %v275, 1.442695
    %v277 = vpow.pop %v276
    %v278 = vadd.f32 %v277, 1.0
    %v279 = vrcp.pop %v278
    %v280 = vmul.f32 %v278, %v279
    %v281 = vsub.f32 1.0, %v280
    %v282 = vmul.f32 %v279, %v281
    %v283 = vadd.f32 %v279, %v282
    %vm284 = vweird.f32 %v278
    %vm285 = vweird.f32 %v279
    %vm286 = vmor %vm284, %vm285
    %v287 = vsel %vm286, %v279, %v283
    %v288 = vand.u32 2147483647, %v278
    %vm289 = vcmp.eq.f32.partialorder %v288, 8.507059e+37
    %v290 = vand.u32 %v278, 2147483648
    %v291 = vor.u32 1.1754944e-38, %v290
    %v292 = vsel %vm289, %v291, %v287
    %v293 = vmul.f32 1.0, %v292
    %v294 = vpack.c.bf16 %v293, %v293
    %v295 = vld [vmem:[#allocation8] sm:$0xf]
    %v296 = vld [vmem:[#allocation8 + $0x4] sm:$0xf]
    %v297 = vld [vmem:[#allocation8 + $0x8] sm:$0xf]
    %v298 = vld [vmem:[#allocation8 + $0xc] sm:$0xf]
    %v299 = vld [vmem:[#allocation8 + $0x10] sm:$0xf]
    %v300 = vld [vmem:[#allocation8 + $0x14] sm:$0xf]
    %v301 = vld [vmem:[#allocation8 + $0x18] sm:$0xf]
    %v302 = vld [vmem:[#allocation8 + $0x1c] sm:$0xf]
    %v303 = vld [vmem:[#allocation8 + $0x20] sm:$0xf]
    %v304 = vld [vmem:[#allocation8 + $0x24] sm:$0xf]
    %v305 = vld [vmem:[#allocation8 + $0x28] sm:$0xf]
    %v306 = vld [vmem:[#allocation8 + $0x2c] sm:$0xf]
    %v307 = vld [vmem:[#allocation8 + $0x30] sm:$0xf]
    %v308 = vld [vmem:[#allocation8 + $0x34] sm:$0xf]
    %v309 = vld [vmem:[#allocation8 + $0x38] sm:$0xf]
    %v310 = vld [vmem:[#allocation8 + $0x3c] sm:$0xf]
    %v311 = vld [vmem:[%s6] sm:$0x1]
    %v313 = vperm.slane %v311, 0
    %v331 = vunpack.c.l.b16 %v295
    %v332 = vunpack.c.l.b16 %v296
    %v333 = vunpack.c.l.b16 %v297
    %v334 = vunpack.c.l.b16 %v298
    %v335 = vunpack.c.l.b16 %v299
    %v336 = vunpack.c.l.b16 %v300
    %v337 = vunpack.c.l.b16 %v301
    %v338 = vunpack.c.l.b16 %v302
    %v339 = vunpack.c.l.b16 %v303
    %v340 = vunpack.c.l.b16 %v304
    %v341 = vunpack.c.l.b16 %v305
    %v342 = vunpack.c.l.b16 %v306
    %v343 = vunpack.c.l.b16 %v307
    %v344 = vunpack.c.l.b16 %v308
    %v345 = vunpack.c.l.b16 %v309
    %v346 = vunpack.c.l.b16 %v310
    %v347 = vpack.c.b16 %v332, %v331
    %v348 = vpack.c.b16 %v334, %v333
    %v349 = vpack.c.b16 %v336, %v335
    %v350 = vpack.c.b16 %v338, %v337
    %v351 = vpack.c.b16 %v340, %v339
    %v352 = vpack.c.b16 %v342, %v341
    %v353 = vpack.c.b16 %v344, %v343
    %v354 = vpack.c.b16 %v346, %v345
    %363 = vmatpush.bf16.msra.mxu0 %v354
    %364 = vmatpush.bf16.msra.mxu0 %v353
    %365 = vmatpush.bf16.msra.mxu0 %v352
    %366 = vmatpush.bf16.msra.mxu0 %v351
    %367 = vmatpush.bf16.msra.mxu0 %v350
    %368 = vmatpush.bf16.msra.mxu0 %v349
    %369 = vmatpush.bf16.msra.mxu0 %v348
    %370 = vmatpush.bf16.msra.mxu0 %v347
    %371 = vmatmul.bf16.gmra.mxu0 %v294
    %v372 = vpop.f32.mrf.mxu0
    %v373 = vadd.f32 %v313, %v372
    %v374 = vpop.f32.mrf.mxu0
    %375 = vdwg.mxu0
    %v376 = vtanh.pop %v373
    %v377 = vpack.c.bf16 %v376, %v376
    %v378 = vld [vmem:[#allocation10] sm:$0xf]
    %v379 = vld [vmem:[#allocation10 + $0x4] sm:$0xf]
    %v380 = vld [vmem:[#allocation10 + $0x8] sm:$0xf]
    %v381 = vld [vmem:[#allocation10 + $0xc] sm:$0xf]
    %v382 = vld [vmem:[#allocation10 + $0x10] sm:$0xf]
    %v383 = vld [vmem:[#allocation10 + $0x14] sm:$0xf]
    %v384 = vld [vmem:[#allocation10 + $0x18] sm:$0xf]
    %v385 = vld [vmem:[#allocation10 + $0x1c] sm:$0xf]
    %v386 = vld [vmem:[#allocation10 + $0x20] sm:$0xf]
    %v387 = vld [vmem:[#allocation10 + $0x24] sm:$0xf]
    %v388 = vld [vmem:[#allocation10 + $0x28] sm:$0xf]
    %v389 = vld [vmem:[#allocation10 + $0x2c] sm:$0xf]
    %v390 = vld [vmem:[#allocation10 + $0x30] sm:$0xf]
    %v391 = vld [vmem:[#allocation10 + $0x34] sm:$0xf]
    %v392 = vld [vmem:[#allocation10 + $0x38] sm:$0xf]
    %v393 = vld [vmem:[#allocation10 + $0x3c] sm:$0xf]
    %v394 = vld [vmem:[%s8] sm:$0x1]
    %v396 = vperm.slane %v394, 0
    %v414 = vunpack.c.l.b16 %v378
    %v415 = vunpack.c.l.b16 %v379
    %v416 = vunpack.c.l.b16 %v380
    %v417 = vunpack.c.l.b16 %v381
    %v418 = vunpack.c.l.b16 %v382
    %v419 = vunpack.c.l.b16 %v383
    %v420 = vunpack.c.l.b16 %v384
    %v421 = vunpack.c.l.b16 %v385
    %v422 = vunpack.c.l.b16 %v386
    %v423 = vunpack.c.l.b16 %v387
    %v424 = vunpack.c.l.b16 %v388
    %v425 = vunpack.c.l.b16 %v389
    %v426 = vunpack.c.l.b16 %v390
    %v427 = vunpack.c.l.b16 %v391
    %v428 = vunpack.c.l.b16 %v392
    %v429 = vunpack.c.l.b16 %v393
    %v430 = vpack.c.b16 %v415, %v414
    %v431 = vpack.c.b16 %v417, %v416
    %v432 = vpack.c.b16 %v419, %v418
    %v433 = vpack.c.b16 %v421, %v420
    %v434 = vpack.c.b16 %v423, %v422
    %v435 = vpack.c.b16 %v425, %v424
    %v436 = vpack.c.b16 %v427, %v426
    %v437 = vpack.c.b16 %v429, %v428
    %446 = vmatpush.bf16.msra.mxu0 %v437
    %447 = vmatpush.bf16.msra.mxu0 %v436
    %448 = vmatpush.bf16.msra.mxu0 %v435
    %449 = vmatpush.bf16.msra.mxu0 %v434
    %450 = vmatpush.bf16.msra.mxu0 %v433
    %451 = vmatpush.bf16.msra.mxu0 %v432
    %452 = vmatpush.bf16.msra.mxu0 %v431
    %453 = vmatpush.bf16.msra.mxu0 %v430
    %454 = vmatmul.bf16.gmra.mxu0 %v377
    %v455 = vpop.f32.mrf.mxu0
    %v456 = vadd.f32 %v396, %v455
    %v457 = vpop.f32.mrf.mxu0
    %458 = vdwg.mxu0
    %459 = vst [vmem:[#allocation11] sm:$0xff] %v456
    // Predicated region
    $region58: #{tpu_custom_call.1} parent=1 // pred_check
      _
    $region59: #{tpu_custom_call.1} parent=1 // pred_check_branch
      %461 = sbr.rel (0) target = $region61
    $region60: #{tpu_custom_call.1} parent=1 // pred_region
      %463 = vsyncadd [#allocation4], 0
      %s465 = sshll.u32 [#allocation11], 4
      %s466 = int_to_ptr.vmem [resolvable:$true] %s465
      %s467 = sshll.u32 %s9, 4
      %s468 = int_to_ptr.hbm [resolvable:$true] %s467
      %470 = dma.vmem_to_hbm [thread:$0]  %s466, 128, %s468, [#allocation4]
    $region61: #{tpu_custom_call.1} parent=1 // pred_fallthru
      _
    // Predicated region
    $region62: #{tpu_custom_call.1} parent=1 // pred_check
      _
    $region63: #{tpu_custom_call.1} parent=1 // pred_check_branch
      %472 = sbr.rel (0) target = $region65
    $region64: #{tpu_custom_call.1} parent=1 // pred_region
      %474 = dma.done [#allocation4], 128
    $region65: #{tpu_custom_call.1} parent=1 // pred_fallthru
      _
    %475 = vsyncpa [#allocation3], 1
    %476 = vsyncpa [#allocation6], 1
    %477 = vsyncpa [#allocation9], 1
    %478 = vsyncpa [#allocation4], 1

</llo_original>
